<compile_context>
chip_gen: v6e
topology: v6e:2x2x1
jax: 0.10.0
libtpu: 0.0.40
codegen_flags: <defaults>
</compile_context>

<pallas_src>
import jax
import jax.numpy as jnp
from jax.experimental import pallas as pl
from jax.experimental.pallas import tpu as pltpu


H1 = 128     # fc1 width (must equal LANE for the packing below)
H2 = 64      # fc2 width
LANE = 128   # TPU lane width / padded block width


def qnetwork_head_kernel(x_ref, w1_ref, w2h_ref, b_ref, head_ref):
    """One batch block: state -> lane-dense head rows.

    x_ref    : [TB, S]     bf16  raw (unpadded) state rows          (streamed)
    w1_ref   : [S, 128]    bf16  fc1 weight                          (resident)
    w2h_ref  : [256, 128]  bf16  rows 0:128 fc2 (cols 64: zero),
                                  rows 128:256 fused head            (resident)
    b_ref    : [3, 128]    f32   rows: b1 | b2 | fused head bias     (resident)
    head_ref : [TB, 128]   f32   lanes 0:A = adv + value, lanes A:2A = adv
    """
    x = x_ref[...]                                                  # bf16

    # fc1 + relu  (K = S, bf16 operands, f32 accumulation)
    h1 = jnp.dot(x, w1_ref[...], preferred_element_type=jnp.float32)
    h1 = jnp.maximum(h1 + b_ref[0:1, :], 0.0)                       # [TB, 128] f32

    # fc2 + relu  (padded cols 64:128 of this weight block are zero -> stay zero)
    h2 = jnp.dot(h1.astype(jnp.bfloat16), w2h_ref[0:LANE, :],
                 preferred_element_type=jnp.float32)
    h2 = jnp.maximum(h2 + b_ref[1:2, :], 0.0)                       # [TB, 128] f32

    # Fused head: cols 0:A -> adv + value, cols A:2A -> adv, cols 2A: -> 0.
    head = jnp.dot(h2.astype(jnp.bfloat16), w2h_ref[LANE:2 * LANE, :],
                   preferred_element_type=jnp.float32) + b_ref[2:3, :]
    head_ref[...] = head                                            # lane-dense store


def _pad2d(a, rows, cols):
    return jnp.pad(a, ((0, rows - a.shape[0]), (0, cols - a.shape[1])))


def _round_up(x, m):
    return -(-x // m) * m


def pack_params(params, action_size):
    """Pack the 8 Linear params into fc1 / (fc2 + fused head) bf16 slabs + f32 bias slab."""
    w1, b1, w2, b2, wv, bv, wa, ba = params
    assert w1.shape[1] == H1 == LANE and w2.shape == (H1, H2)
    assert H2 <= LANE, "fc2 width must fit one lane tile"
    assert 2 * action_size <= LANE, "need 2*action_size <= 128 for the fused head"

    # Fused head: cols 0:A -> wa + wv (value folded in), cols A:2A -> wa (raw adv).
    wh = jnp.concatenate([wa + wv, wa], axis=1)            # [H2, 2A]
    bh = jnp.concatenate([ba + bv, ba], axis=1)            # [1,  2A]

    w1_slab = w1.astype(jnp.bfloat16)                      # [S, 128]
    w2h_slab = jnp.concatenate([
        _pad2d(w2, LANE, LANE),                            # rows   0:128  fc2
        _pad2d(wh, LANE, LANE),                            # rows 128:256  fused head
    ], axis=0).astype(jnp.bfloat16)                        # [256, 128]
    b_slab = jnp.concatenate([
        _pad2d(b1, 1, LANE),
        _pad2d(b2, 1, LANE),
        _pad2d(bh, 1, LANE),
    ], axis=0).astype(jnp.float32)                         # [3, 128]
    return w1_slab, w2h_slab, b_slab


def qnetwork_forward(state, packed, action_size):
    w1_slab, w2h_slab, b_slab = packed
    B, S = state.shape
    A = action_size
    assert w1_slab.shape[0] == S, "state_size mismatch with packed fc1 weights"
    assert 2 * A <= LANE and H2 <= LANE

    # Batch tile: up to 256 rows (fills the v6e/v7x 256-row MXU; >=128 for v5e),
    # rounded to the 8-row sublane granule for small batches.
    TB = min(256, _round_up(B, 8))
    B_pad = _round_up(B, TB)
    num_blocks = pl.cdiv(B_pad, TB)

    # Stream the raw state in bf16 (no 128-lane padding in HBM).
    x = state.astype(jnp.bfloat16)
    if B_pad != B:
        x = jnp.pad(x, ((0, B_pad - B), (0, 0)))

    head = pl.pallas_call(
        qnetwork_head_kernel,
        out_shape=jax.ShapeDtypeStruct((B_pad, LANE), jnp.float32),
        grid_spec=pltpu.PrefetchScalarGridSpec(
            num_scalar_prefetch=0,
            grid=(num_blocks,),
            in_specs=[
                pl.BlockSpec((TB, S), lambda i: (i, 0)),             # streamed state
                pl.BlockSpec((S, LANE), lambda i: (0, 0)),           # resident fc1 W
                pl.BlockSpec((2 * LANE, LANE), lambda i: (0, 0)),    # resident fc2+head W
                pl.BlockSpec((3, LANE), lambda i: (0, 0)),           # resident biases
            ],
            out_specs=pl.BlockSpec((TB, LANE), lambda i: (i, 0)),    # lane-dense head
        ),
        compiler_params=pltpu.CompilerParams(
            dimension_semantics=("parallel",)),                      # megacore batch split
    )(x, w1_slab, w2h_slab, b_slab)

    # Epilogue: global advantage mean (torch's advantage.mean() over the whole [B, A]
    # tensor). Only the first B rows participate, so batch padding never leaks in.
    head = head[:B]
    q_plus_v = head[:, :A]                 # adv + value (value folded in the MXU)
    adv = head[:, A:2 * A]                 # raw advantage
    adv_mean = jnp.sum(adv) * (1.0 / (B * A))
    return q_plus_v - adv_mean


def init_params(key, state_size, action_size):
    """PyTorch nn.Linear default init: U(-1/sqrt(fan_in), 1/sqrt(fan_in)).
    Weights stored as [in, out] (transposed vs. torch's [out, in])."""
    def linear(k, fan_in, fan_out):
        kw, kb = jax.random.split(k)
        bound = 1.0 / jnp.sqrt(fan_in)
        w = jax.random.uniform(kw, (fan_in, fan_out), jnp.float32, -bound, bound)
        b = jax.random.uniform(kb, (1, fan_out), jnp.float32, -bound, bound)
        return w, b

    k1, k2, k3, k4 = jax.random.split(key, 4)
    w1, b1 = linear(k1, state_size, H1)
    w2, b2 = linear(k2, H1, H2)
    wv, bv = linear(k3, H2, 1)
    wa, ba = linear(k4, H2, action_size)
    return (w1, b1, w2, b2, wv, bv, wa, ba)


def reference_forward(state, params):
    """Pure-JAX reference: faithful torch math with bf16 MXU-operand precision.
    (The kernel additionally folds wv into the head weights before the bf16 cast,
    so it matches this reference to ~1e-3; tolerance below allows for that.)"""
    w1, b1, w2, b2, wv, bv, wa, ba = params
    bf = jnp.bfloat16

    def mm(a, w):
        return jnp.dot(a.astype(bf), w.astype(bf),
                       preferred_element_type=jnp.float32)

    h1 = jnp.maximum(mm(state, w1) + b1, 0.0)
    h2 = jnp.maximum(mm(h1, w2) + b2, 0.0)
    value = mm(h2, wv) + bv
    adv = mm(h2, wa) + ba
    return adv - jnp.mean(adv) + value


if __name__ == "__main__":
    state_size = 8
    action_size = 4
    batch = 2

    key = jax.random.PRNGKey(0)
    k_params, k_state = jax.random.split(key)

    params = init_params(k_params, state_size, action_size)
    state = jax.random.normal(k_state, (batch, state_size), jnp.float32)

    packed = pack_params(params, action_size)

    out = qnetwork_forward(state, packed, action_size)
    out = jax.block_until_ready(out)

    ref = reference_forward(state, params)
    assert out.shape == (batch, action_size)
    err = jnp.max(jnp.abs(out - ref))
    assert jnp.allclose(out, ref, atol=1e-2, rtol=1e-2), f"mismatch, max err={err}"

    print("KERNEL_OK")
</pallas_src>

<mosaic_0001>
module attributes {stable_mosaic.version = 11 : i64} {
  func.func @qnetwork_head_kernel(%arg0: i32, %arg1: memref<8x8xbf16, #tpu.memory_space<vmem>>, %arg2: memref<8x128xbf16, #tpu.memory_space<vmem>>, %arg3: memref<256x128xbf16, #tpu.memory_space<vmem>>, %arg4: memref<3x128xf32, #tpu.memory_space<vmem>>, %arg5: memref<8x128xf32, #tpu.memory_space<vmem>>) attributes {dimension_semantics = [#tpu.dimension_semantics<parallel>], iteration_bounds = array<i64: 1>, scalar_prefetch = 0 : i64, scratch_operands = 0 : i64, tpu.core_type = #tpu.core_type<tc>, window_params = [{transform_indices = @transform_0, window_bounds = array<i64: 8, 8>}, {pipeline_mode = #tpu.pipeline_mode<synchronous>, transform_indices = @transform_1, window_bounds = array<i64: 8, 128>}, {pipeline_mode = #tpu.pipeline_mode<synchronous>, transform_indices = @transform_2, window_bounds = array<i64: 256, 128>}, {pipeline_mode = #tpu.pipeline_mode<synchronous>, transform_indices = @transform_3, window_bounds = array<i64: 3, 128>}, {transform_indices = @transform_4, window_bounds = array<i64: 8, 128>}]} {
    %c0 = arith.constant 0 : index
    %c0_0 = arith.constant 0 : index
    %0 = vector.load %arg1[%c0, %c0_0] : memref<8x8xbf16, #tpu.memory_space<vmem>>, vector<8x8xbf16>
    %c0_1 = arith.constant 0 : index
    %c0_2 = arith.constant 0 : index
    %1 = vector.load %arg2[%c0_1, %c0_2] : memref<8x128xbf16, #tpu.memory_space<vmem>>, vector<8x128xbf16>
    %cst = arith.constant dense<0.000000e+00> : vector<8x128xf32>
    %2 = tpu.matmul %0, %1, %cst {dimension_numbers = #tpu.dot_dimension_numbers<[1], [0], [0], [1], [0, 0, 1, 1], [], []>} : vector<8x8xbf16>, vector<8x128xbf16>, vector<8x128xf32> -> vector<8x128xf32>
    %c0_3 = arith.constant 0 : index
    %c0_4 = arith.constant 0 : index
    %3 = vector.load %arg4[%c0_3, %c0_4] : memref<3x128xf32, #tpu.memory_space<vmem>>, vector<1x128xf32>
    %4 = vector.broadcast %3 : vector<1x128xf32> to vector<8x128xf32>
    %5 = arith.addf %2, %4 : vector<8x128xf32>
    %cst_5 = arith.constant 0.000000e+00 : f32
    %6 = vector.broadcast %cst_5 : f32 to vector<8x128xf32>
    %7 = arith.maximumf %5, %6 : vector<8x128xf32>
    %8 = arith.truncf %7 : vector<8x128xf32> to vector<8x128xbf16>
    %c0_6 = arith.constant 0 : index
    %c0_7 = arith.constant 0 : index
    %9 = vector.load %arg3[%c0_6, %c0_7] : memref<256x128xbf16, #tpu.memory_space<vmem>>, vector<128x128xbf16>
    %cst_8 = arith.constant dense<0.000000e+00> : vector<8x128xf32>
    %10 = tpu.matmul %8, %9, %cst_8 {dimension_numbers = #tpu.dot_dimension_numbers<[1], [0], [0], [1], [0, 0, 1, 1], [], []>} : vector<8x128xbf16>, vector<128x128xbf16>, vector<8x128xf32> -> vector<8x128xf32>
    %c1 = arith.constant 1 : index
    %c0_9 = arith.constant 0 : index
    %11 = vector.load %arg4[%c1, %c0_9] : memref<3x128xf32, #tpu.memory_space<vmem>>, vector<1x128xf32>
    %12 = vector.broadcast %11 : vector<1x128xf32> to vector<8x128xf32>
    %13 = arith.addf %10, %12 : vector<8x128xf32>
    %cst_10 = arith.constant 0.000000e+00 : f32
    %14 = vector.broadcast %cst_10 : f32 to vector<8x128xf32>
    %15 = arith.maximumf %13, %14 : vector<8x128xf32>
    %16 = arith.truncf %15 : vector<8x128xf32> to vector<8x128xbf16>
    %c128 = arith.constant 128 : index
    %c0_11 = arith.constant 0 : index
    %17 = vector.load %arg3[%c128, %c0_11] : memref<256x128xbf16, #tpu.memory_space<vmem>>, vector<128x128xbf16>
    %cst_12 = arith.constant dense<0.000000e+00> : vector<8x128xf32>
    %18 = tpu.matmul %16, %17, %cst_12 {dimension_numbers = #tpu.dot_dimension_numbers<[1], [0], [0], [1], [0, 0, 1, 1], [], []>} : vector<8x128xbf16>, vector<128x128xbf16>, vector<8x128xf32> -> vector<8x128xf32>
    %c2 = arith.constant 2 : index
    %c0_13 = arith.constant 0 : index
    %19 = vector.load %arg4[%c2, %c0_13] : memref<3x128xf32, #tpu.memory_space<vmem>>, vector<1x128xf32>
    %20 = vector.broadcast %19 : vector<1x128xf32> to vector<8x128xf32>
    %21 = arith.addf %18, %20 : vector<8x128xf32>
    %c0_14 = arith.constant 0 : index
    %c0_15 = arith.constant 0 : index
    %22 = vector.load %arg5[%c0_14, %c0_15] : memref<8x128xf32, #tpu.memory_space<vmem>>, vector<8x128xf32>
    tpu.vector_store %arg5[%c0_14, %c0_15], %21 {strides = array<i32>} : memref<8x128xf32, #tpu.memory_space<vmem>>, vector<8x128xf32>,
    return
  }
  func.func @transform_0(%arg0: i32) -> (i32, i32) {
    %c0_i32 = arith.constant 0 : i32
    %c0_i32_0 = arith.constant 0 : i32
    return %arg0, %c0_i32 : i32, i32
  }
  func.func @transform_1(%arg0: i32) -> (i32, i32) {
    %c0_i32 = arith.constant 0 : i32
    %c0_i32_0 = arith.constant 0 : i32
    %c0_i32_1 = arith.constant 0 : i32
    return %c0_i32, %c0_i32_0 : i32, i32
  }
  func.func @transform_2(%arg0: i32) -> (i32, i32) {
    %c0_i32 = arith.constant 0 : i32
    %c0_i32_0 = arith.constant 0 : i32
    %c0_i32_1 = arith.constant 0 : i32
    return %c0_i32, %c0_i32_0 : i32, i32
  }
  func.func @transform_3(%arg0: i32) -> (i32, i32) {
    %c0_i32 = arith.constant 0 : i32
    %c0_i32_0 = arith.constant 0 : i32
    %c0_i32_1 = arith.constant 0 : i32
    return %c0_i32, %c0_i32_0 : i32, i32
  }
  func.func @transform_4(%arg0: i32) -> (i32, i32) {
    %c0_i32 = arith.constant 0 : i32
    %c0_i32_0 = arith.constant 0 : i32
    return %arg0, %c0_i32 : i32, i32
  }
}

</mosaic_0001>

<llo_original>
// kernel: tpu_custom_call.1
$region0: #{tpu_custom_call.1}
  #allocation0 [shape = 'u32[]', space=smem, size = 0x4, offset = 0x4, fixed_abs, tag = 'smem constant byte address 0x4 - core index']
  #allocation1 [shape = 'u32[144,128]{1,0:T(1,128)}', space=vmem, size = 0x12000, scoped, tag = 'internal scratch']
  %s0 = inlined_call_operand.hbm [shape: bf16[8,8], index: 0, kind: input, shape index: {}]
  %s1 = inlined_call_operand.hbm [shape: bf16[8,128], index: 1, kind: input, shape index: {}]
  %s2 = inlined_call_operand.hbm [shape: bf16[256,128], index: 2, kind: input, shape index: {}]
  %s3 = inlined_call_operand.vmem [shape: f32[3,128], index: 3, kind: input, shape index: {}]
  %s4 = inlined_call_operand.hbm [shape: f32[8,128], index: 4, kind: output, shape index: {}]
  %s5 = sld [smem:[#allocation0]]
  $region38: #{tpu_custom_call.1} parent=0
    _
  %s7 = ssub.s32 1, %s5
  %s8 = scalar_select 0, %s7, %s5
  $region1: #{tpu_custom_call.1} parent=0
    #allocation2 [shape = 'u8[2048]{0}', space=vmem, size = 0x800, scoped, tag = 'input window, operand 0, single buffered']
    #allocation3 [shape = 's32[1]{0}', space=sflag, size = 0x4, scoped, tag = 'scoped memory for tpu_custom_call.1']
    #allocation4 [shape = 's32[1]{0}', space=sflag, size = 0x4, scoped, tag = 'scoped memory for tpu_custom_call.1']
    #allocation5 [shape = 'u8[2048]{0}', space=vmem, size = 0x800, scoped, tag = 'input window, operand 1, single buffered']
    #allocation6 [shape = 's32[1]{0}', space=sflag, size = 0x4, scoped, tag = 'scoped memory for tpu_custom_call.1']
    #allocation7 [shape = 'u8[65536]{0}', space=vmem, size = 0x10000, scoped, tag = 'input window, operand 2, single buffered']
    #allocation8 [shape = 'u8[4096]{0}', space=vmem, size = 0x1000, scoped, tag = 'output window, operand 0, single buffered']
    %9 = vsyncpa [#allocation3], 0
    %10 = vsyncpa [#allocation6], 0
    %11 = vsyncpa [#allocation4], 0
    // Predicated region
    $region2: #{tpu_custom_call.1} parent=1 // pred_check
      _
    $region3: #{tpu_custom_call.1} parent=1 // pred_check_branch
      %13 = sbr.rel (0) target = $region5
    $region4: #{tpu_custom_call.1} parent=1 // pred_region
      %s15 = ssub.s32 64, 64
      %16 = vsyncadd [#allocation3], %s15
      %s18 = sshll.u32 [#allocation2], 4
      %s19 = int_to_ptr.vmem [resolvable:$true] %s18
      %21 = dma.hbm_to_vmem [thread:$0]  %s0, 64, %s19, [#allocation3]
    $region5: #{tpu_custom_call.1} parent=1 // pred_fallthru
      _
    // Predicated region
    $region6: #{tpu_custom_call.1} parent=1 // pred_check
      _
    $region7: #{tpu_custom_call.1} parent=1 // pred_check_branch
      %23 = sbr.rel (0) target = $region9
    $region8: #{tpu_custom_call.1} parent=1 // pred_region
      %s25 = ssub.s32 64, 64
      %26 = vsyncadd [#allocation6], %s25
      %s28 = sshll.u32 [#allocation5], 4
      %s29 = int_to_ptr.vmem [resolvable:$true] %s28
      %31 = dma.hbm_to_vmem [thread:$0]  %s1, 64, %s29, [#allocation6]
    $region9: #{tpu_custom_call.1} parent=1 // pred_fallthru
      _
    // Predicated region
    $region10: #{tpu_custom_call.1} parent=1 // pred_check
      _
    $region11: #{tpu_custom_call.1} parent=1 // pred_check_branch
      %33 = sbr.rel (0) target = $region13
    $region12: #{tpu_custom_call.1} parent=1 // pred_region
      %s35 = ssub.s32 2048, 2048
      %36 = vsyncadd [#allocation6], %s35
      %s37 = sshll.u32 [#allocation7], 4
      %s38 = int_to_ptr.vmem [resolvable:$true] %s37
      %43 = dma.hbm_to_vmem [thread:$0]  %s2, 2048, %s38, [#allocation6], 64, 64, 4
    $region13: #{tpu_custom_call.1} parent=1 // pred_fallthru
      _
    // Predicated region
    $region14: #{tpu_custom_call.1} parent=1 // pred_check
      _
    $region15: #{tpu_custom_call.1} parent=1 // pred_check_branch
      %45 = sbr.rel (0) target = $region17
    $region16: #{tpu_custom_call.1} parent=1 // pred_region
      _
    $region17: #{tpu_custom_call.1} parent=1 // pred_fallthru
      _
    // Predicated region
    $region18: #{tpu_custom_call.1} parent=1 // pred_check
      _
    $region19: #{tpu_custom_call.1} parent=1 // pred_check_branch
      %47 = sbr.rel (0) target = $region21
    $region20: #{tpu_custom_call.1} parent=1 // pred_region
      %48 = dma.done [#allocation3], 64
    $region21: #{tpu_custom_call.1} parent=1 // pred_fallthru
      _
    // Predicated region
    $region22: #{tpu_custom_call.1} parent=1 // pred_check
      _
    $region23: #{tpu_custom_call.1} parent=1 // pred_check_branch
      %50 = sbr.rel (0) target = $region25
    $region24: #{tpu_custom_call.1} parent=1 // pred_region
      %51 = dma.done [#allocation6], 64
    $region25: #{tpu_custom_call.1} parent=1 // pred_fallthru
      _
    // Predicated region
    $region26: #{tpu_custom_call.1} parent=1 // pred_check
      _
    $region27: #{tpu_custom_call.1} parent=1 // pred_check_branch
      %53 = sbr.rel (0) target = $region29
    $region28: #{tpu_custom_call.1} parent=1 // pred_region
      %54 = dma.done [#allocation6], 2048
    $region29: #{tpu_custom_call.1} parent=1 // pred_fallthru
      _
    %v56 = vld [vmem:[#allocation2] sm:$0xf]
    %v57 = vld [vmem:[#allocation5] sm:$0xf]
    %v58 = vld [vmem:[%s3] sm:$0x1]
    %v59 = vlaneseq
    %v60 = vshrl.u32 %v59, 7
    %v61 = vsub.s32 0, %v60
    %v62 = vrot.slane %v58, %v61
    %vm63 = vcmask 64512
    %v65 = vsel %vm63, %v56, 0
    %vm67 = vcmask 1043456
    %v69 = vsel %vm67, %v57, 0
    %71 = vmatprep.subr.bf16.mxu0 0
    %72 = vmatpush1.bf16.msra.mxu0 0
    %73 = vmatprep.subr.bf16.mxu0 0
    %74 = vmatpush1.bf16.msra.mxu0 0
    %75 = vmatprep.subr.bf16.mxu0 0
    %76 = vmatpush1.bf16.msra.mxu0 0
    %77 = vmatprep.subr.bf16.mxu0 0
    %78 = vmatpush1.bf16.msra.mxu0 0
    %79 = vmatprep.subr.bf16.mxu0 0
    %80 = vmatpush1.bf16.msra.mxu0 0
    %81 = vmatprep.subr.bf16.mxu0 0
    %82 = vmatpush1.bf16.msra.mxu0 0
    %83 = vmatprep.subr.bf16.mxu0 0
    %84 = vmatpush1.bf16.msra.mxu0 0
    %85 = vmatprep.subr.bf16.mxu0 0
    %86 = vmatpush1.bf16.msra.mxu0 %v69
    %87 = vmatprep.subr.bf16.mxu0 0
    %88 = vmatpush2.bf16.msra.mxu0 0
    %89 = vmatprep.subr.bf16.mxu0 0
    %90 = vmatpush2.bf16.msra.mxu0 0
    %91 = vmatprep.subr.bf16.mxu0 0
    %92 = vmatpush2.bf16.msra.mxu0 0
    %93 = vmatprep.subr.bf16.mxu0 0
    %94 = vmatpush2.bf16.msra.mxu0 0
    %95 = vmatprep.subr.bf16.mxu0 0
    %96 = vmatpush2.bf16.msra.mxu0 0
    %97 = vmatprep.subr.bf16.mxu0 0
    %98 = vmatpush2.bf16.msra.mxu0 0
    %99 = vmatprep.subr.bf16.mxu0 0
    %100 = vmatpush2.bf16.msra.mxu0 0
    %101 = vmatprep.subr.bf16.mxu0 0
    %102 = vmatpush2.bf16.msra.mxu0 0
    %103 = vmatprep.mubr.bf16.mxu0 0
    %104 = vmatmul.mubr.bf16.gmra.mxu0 %v65
    %v105 = vpop.f32.mrf.mxu0
    %v106 = vadd.f32 %v62, %v105
    %v107 = vpop.f32.mrf.mxu0
    %v108 = vpop.f32.mrf.mxu0
    %v109 = vpop.f32.mrf.mxu0
    %110 = vdwg.mxu0
    %v111 = vmax.f32 %v106, 0.0
    %v112 = vpack.c.bf16 %v111, %v111
    %v113 = vld [vmem:[#allocation7] sm:$0xf]
    %v114 = vld [vmem:[#allocation7 + $0x4] sm:$0xf]
    %v115 = vld [vmem:[#allocation7 + $0x8] sm:$0xf]
    %v116 = vld [vmem:[#allocation7 + $0xc] sm:$0xf]
    %v117 = vld [vmem:[#allocation7 + $0x10] sm:$0xf]
    %v118 = vld [vmem:[#allocation7 + $0x14] sm:$0xf]
    %v119 = vld [vmem:[#allocation7 + $0x18] sm:$0xf]
    %v120 = vld [vmem:[#allocation7 + $0x1c] sm:$0xf]
    %v121 = vld [vmem:[#allocation7 + $0x20] sm:$0xf]
    %v122 = vld [vmem:[#allocation7 + $0x24] sm:$0xf]
    %v123 = vld [vmem:[#allocation7 + $0x28] sm:$0xf]
    %v124 = vld [vmem:[#allocation7 + $0x2c] sm:$0xf]
    %v125 = vld [vmem:[#allocation7 + $0x30] sm:$0xf]
    %v126 = vld [vmem:[#allocation7 + $0x34] sm:$0xf]
    %v127 = vld [vmem:[#allocation7 + $0x38] sm:$0xf]
    %v128 = vld [vmem:[#allocation7 + $0x3c] sm:$0xf]
    %v129 = vld [vmem:[%s3 + $0x1] sm:$0x1]
    %v130 = vlaneseq
    %v131 = vshrl.u32 %v130, 7
    %v132 = vsub.s32 0, %v131
    %v133 = vrot.slane %v129, %v132
    %v150 = vunpack.c.l.b16 %v113
    %v151 = vunpack.c.l.b16 %v114
    %v152 = vunpack.c.l.b16 %v115
    %v153 = vunpack.c.l.b16 %v116
    %v154 = vunpack.c.l.b16 %v117
    %v155 = vunpack.c.l.b16 %v118
    %v156 = vunpack.c.l.b16 %v119
    %v157 = vunpack.c.l.b16 %v120
    %v158 = vunpack.c.l.b16 %v121
    %v159 = vunpack.c.l.b16 %v122
    %v160 = vunpack.c.l.b16 %v123
    %v161 = vunpack.c.l.b16 %v124
    %v162 = vunpack.c.l.b16 %v125
    %v163 = vunpack.c.l.b16 %v126
    %v164 = vunpack.c.l.b16 %v127
    %v165 = vunpack.c.l.b16 %v128
    %v166 = vpack.c.b16 %v151, %v150
    %v167 = vpack.c.b16 %v153, %v152
    %v168 = vpack.c.b16 %v155, %v154
    %v169 = vpack.c.b16 %v157, %v156
    %v170 = vpack.c.b16 %v159, %v158
    %v171 = vpack.c.b16 %v161, %v160
    %v172 = vpack.c.b16 %v163, %v162
    %v173 = vpack.c.b16 %v165, %v164
    %182 = vmatprep.subr.bf16.mxu0 0
    %183 = vmatpush1.bf16.msra.mxu0 %v173
    %184 = vmatprep.subr.bf16.mxu0 0
    %185 = vmatpush1.bf16.msra.mxu0 %v172
    %186 = vmatprep.subr.bf16.mxu0 0
    %187 = vmatpush1.bf16.msra.mxu0 %v171
    %188 = vmatprep.subr.bf16.mxu0 0
    %189 = vmatpush1.bf16.msra.mxu0 %v170
    %190 = vmatprep.subr.bf16.mxu0 0
    %191 = vmatpush1.bf16.msra.mxu0 %v169
    %192 = vmatprep.subr.bf16.mxu0 0
    %193 = vmatpush1.bf16.msra.mxu0 %v168
    %194 = vmatprep.subr.bf16.mxu0 0
    %195 = vmatpush1.bf16.msra.mxu0 %v167
    %196 = vmatprep.subr.bf16.mxu0 0
    %197 = vmatpush1.bf16.msra.mxu0 %v166
    %198 = vmatprep.subr.bf16.mxu0 0
    %199 = vmatpush2.bf16.msra.mxu0 0
    %200 = vmatprep.subr.bf16.mxu0 0
    %201 = vmatpush2.bf16.msra.mxu0 0
    %202 = vmatprep.subr.bf16.mxu0 0
    %203 = vmatpush2.bf16.msra.mxu0 0
    %204 = vmatprep.subr.bf16.mxu0 0
    %205 = vmatpush2.bf16.msra.mxu0 0
    %206 = vmatprep.subr.bf16.mxu0 0
    %207 = vmatpush2.bf16.msra.mxu0 0
    %208 = vmatprep.subr.bf16.mxu0 0
    %209 = vmatpush2.bf16.msra.mxu0 0
    %210 = vmatprep.subr.bf16.mxu0 0
    %211 = vmatpush2.bf16.msra.mxu0 0
    %212 = vmatprep.subr.bf16.mxu0 0
    %213 = vmatpush2.bf16.msra.mxu0 0
    %214 = vmatprep.mubr.bf16.mxu0 0
    %215 = vmatmul.mubr.bf16.gmra.mxu0 %v112
    %v216 = vpop.f32.mrf.mxu0
    %v217 = vadd.f32 %v133, %v216
    %v218 = vpop.f32.mrf.mxu0
    %v219 = vpop.f32.mrf.mxu0
    %v220 = vpop.f32.mrf.mxu0
    %221 = vdwg.mxu0
    %v222 = vmax.f32 %v217, 0.0
    %v223 = vpack.c.bf16 %v222, %v222
    %v224 = vld [vmem:[#allocation7 + $0x40] sm:$0xf]
    %v225 = vld [vmem:[#allocation7 + $0x44] sm:$0xf]
    %v226 = vld [vmem:[#allocation7 + $0x48] sm:$0xf]
    %v227 = vld [vmem:[#allocation7 + $0x4c] sm:$0xf]
    %v228 = vld [vmem:[#allocation7 + $0x50] sm:$0xf]
    %v229 = vld [vmem:[#allocation7 + $0x54] sm:$0xf]
    %v230 = vld [vmem:[#allocation7 + $0x58] sm:$0xf]
    %v231 = vld [vmem:[#allocation7 + $0x5c] sm:$0xf]
    %v232 = vld [vmem:[#allocation7 + $0x60] sm:$0xf]
    %v233 = vld [vmem:[#allocation7 + $0x64] sm:$0xf]
    %v234 = vld [vmem:[#allocation7 + $0x68] sm:$0xf]
    %v235 = vld [vmem:[#allocation7 + $0x6c] sm:$0xf]
    %v236 = vld [vmem:[#allocation7 + $0x70] sm:$0xf]
    %v237 = vld [vmem:[#allocation7 + $0x74] sm:$0xf]
    %v238 = vld [vmem:[#allocation7 + $0x78] sm:$0xf]
    %v239 = vld [vmem:[#allocation7 + $0x7c] sm:$0xf]
    %v240 = vld [vmem:[%s3 + $0x2] sm:$0x1]
    %v241 = vlaneseq
    %v242 = vshrl.u32 %v241, 7
    %v243 = vsub.s32 0, %v242
    %v244 = vrot.slane %v240, %v243
    %v261 = vunpack.c.l.b16 %v224
    %v262 = vunpack.c.l.b16 %v225
    %v263 = vunpack.c.l.b16 %v226
    %v264 = vunpack.c.l.b16 %v227
    %v265 = vunpack.c.l.b16 %v228
    %v266 = vunpack.c.l.b16 %v229
    %v267 = vunpack.c.l.b16 %v230
    %v268 = vunpack.c.l.b16 %v231
    %v269 = vunpack.c.l.b16 %v232
    %v270 = vunpack.c.l.b16 %v233
    %v271 = vunpack.c.l.b16 %v234
    %v272 = vunpack.c.l.b16 %v235
    %v273 = vunpack.c.l.b16 %v236
    %v274 = vunpack.c.l.b16 %v237
    %v275 = vunpack.c.l.b16 %v238
    %v276 = vunpack.c.l.b16 %v239
    %v277 = vpack.c.b16 %v262, %v261
    %v278 = vpack.c.b16 %v264, %v263
    %v279 = vpack.c.b16 %v266, %v265
    %v280 = vpack.c.b16 %v268, %v267
    %v281 = vpack.c.b16 %v270, %v269
    %v282 = vpack.c.b16 %v272, %v271
    %v283 = vpack.c.b16 %v274, %v273
    %v284 = vpack.c.b16 %v276, %v275
    %293 = vmatprep.subr.bf16.mxu0 0
    %294 = vmatpush1.bf16.msra.mxu0 %v284
    %295 = vmatprep.subr.bf16.mxu0 0
    %296 = vmatpush1.bf16.msra.mxu0 %v283
    %297 = vmatprep.subr.bf16.mxu0 0
    %298 = vmatpush1.bf16.msra.mxu0 %v282
    %299 = vmatprep.subr.bf16.mxu0 0
    %300 = vmatpush1.bf16.msra.mxu0 %v281
    %301 = vmatprep.subr.bf16.mxu0 0
    %302 = vmatpush1.bf16.msra.mxu0 %v280
    %303 = vmatprep.subr.bf16.mxu0 0
    %304 = vmatpush1.bf16.msra.mxu0 %v279
    %305 = vmatprep.subr.bf16.mxu0 0
    %306 = vmatpush1.bf16.msra.mxu0 %v278
    %307 = vmatprep.subr.bf16.mxu0 0
    %308 = vmatpush1.bf16.msra.mxu0 %v277
    %309 = vmatprep.subr.bf16.mxu0 0
    %310 = vmatpush2.bf16.msra.mxu0 0
    %311 = vmatprep.subr.bf16.mxu0 0
    %312 = vmatpush2.bf16.msra.mxu0 0
    %313 = vmatprep.subr.bf16.mxu0 0
    %314 = vmatpush2.bf16.msra.mxu0 0
    %315 = vmatprep.subr.bf16.mxu0 0
    %316 = vmatpush2.bf16.msra.mxu0 0
    %317 = vmatprep.subr.bf16.mxu0 0
    %318 = vmatpush2.bf16.msra.mxu0 0
    %319 = vmatprep.subr.bf16.mxu0 0
    %320 = vmatpush2.bf16.msra.mxu0 0
    %321 = vmatprep.subr.bf16.mxu0 0
    %322 = vmatpush2.bf16.msra.mxu0 0
    %323 = vmatprep.subr.bf16.mxu0 0
    %324 = vmatpush2.bf16.msra.mxu0 0
    %325 = vmatprep.mubr.bf16.mxu0 0
    %326 = vmatmul.mubr.bf16.gmra.mxu0 %v223
    %v327 = vpop.f32.mrf.mxu0
    %v328 = vadd.f32 %v244, %v327
    %v329 = vpop.f32.mrf.mxu0
    %v330 = vpop.f32.mrf.mxu0
    %v331 = vpop.f32.mrf.mxu0
    %332 = vdwg.mxu0
    %333 = vst [vmem:[#allocation8] sm:$0xff] %v328
    // Predicated region
    $region30: #{tpu_custom_call.1} parent=1 // pred_check
      _
    $region31: #{tpu_custom_call.1} parent=1 // pred_check_branch
      %335 = sbr.rel (0) target = $region33
    $region32: #{tpu_custom_call.1} parent=1 // pred_region
      %s337 = ssub.s32 128, 128
      %338 = vsyncadd [#allocation4], %s337
      %s340 = sshll.u32 [#allocation8], 4
      %s341 = int_to_ptr.vmem [resolvable:$true] %s340
      %343 = dma.vmem_to_hbm [thread:$0]  %s341, 128, %s4, [#allocation4]
    $region33: #{tpu_custom_call.1} parent=1 // pred_fallthru
      _
    // Predicated region
    $region34: #{tpu_custom_call.1} parent=1 // pred_check
      _
    $region35: #{tpu_custom_call.1} parent=1 // pred_check_branch
      %345 = sbr.rel (0) target = $region37
    $region36: #{tpu_custom_call.1} parent=1 // pred_region
      %346 = dma.done [#allocation4], 128
    $region37: #{tpu_custom_call.1} parent=1 // pred_fallthru
      _
    %347 = vsyncpa [#allocation3], 1
    %348 = vsyncpa [#allocation6], 1
    %349 = vsyncpa [#allocation4], 1

</llo_original>
